<compile_context>
chip_gen: v5e
topology: v5e:2x2
jax: 0.10.0
libtpu: 0.0.40
codegen_flags: <defaults>
</compile_context>

<pallas_src>
import jax
import jax.numpy as jnp
from jax.experimental import pallas as pl
from jax.experimental.pallas import tpu as pltpu


def _conv_relu_kernel(x_ref, w_ref, b_ref, o_ref):
    # x_ref: (K_pad, HWp)    im2col patches for one image (lane-dense in H*W)
    # w_ref: (C_out, K_pad)  flattened OIHW conv weights (resident across grid)
    # b_ref: (C_out, 1)      bias (resident across grid)
    # o_ref: (C_out, HWp)    conv + ReLU output for one image (lane-dense)
    acc = jnp.dot(w_ref[...], x_ref[...], preferred_element_type=jnp.float32)
    acc = acc + b_ref[...]                                    # lane-broadcast bias
    o_ref[...] = jnp.maximum(acc, 0.0).astype(o_ref.dtype)    # ReLU


def basic_block_forward(x_nchw, weight_oihw, bias):
    """BasicBlock forward: conv2d(ksize=3, stride=1, pad=1) + ReLU.

    x_nchw:      (N, C_in, H, W)        float32 (PyTorch layout)
    weight_oihw: (C_out, C_in, KH, KW)  float32 (PyTorch Conv2d layout)
    bias:        (C_out,)               float32
    returns:     (N, C_out, H, W)       float32
    """
    N, C_in, H, W = x_nchw.shape
    C_out, _, KH, KW = weight_oihw.shape
    pad = 1                     # ksize=3, stride=1, pad=1 -> same spatial size
    HW = H * W
    K_dim = C_in * KH * KW
    K_pad = pl.cdiv(K_dim, 8) * 8        # 36 -> 40: whole-vreg sublane groups
    HWp = pl.cdiv(HW, 128) * 128         # lane-dense output (no-op here: 256)

    # --- im2col glue (fused into the pallas_call operand) -----------------
    x_p = jnp.pad(x_nchw, ((0, 0), (0, 0), (pad, pad), (pad, pad)))
    # (N, C_in, KH*KW, H, W): taps ordered (kh, kw), matching OIHW flattening.
    patches = jnp.stack(
        [x_p[:, :, kh:kh + H, kw:kw + W] for kh in range(KH) for kw in range(KW)],
        axis=2,
    )
    # Contiguous merge only — no transpose needed in this layout.
    x_col = patches.reshape(N, K_dim, HW)
    x_col = jnp.pad(x_col, ((0, 0), (0, K_pad - K_dim), (0, HWp - HW)))

    w_col = jnp.pad(weight_oihw.reshape(C_out, K_dim), ((0, 0), (0, K_pad - K_dim)))
    bias_2d = bias.reshape(C_out, 1)

    cost = pl.CostEstimate(
        flops=2 * C_out * K_dim * N * HW,
        transcendentals=0,
        bytes_accessed=4 * (N * K_pad * HWp + C_out * K_pad + N * C_out * HWp),
    )

    out = pl.pallas_call(
        _conv_relu_kernel,
        out_shape=jax.ShapeDtypeStruct((N, C_out, HWp), jnp.float32),
        grid_spec=pltpu.PrefetchScalarGridSpec(
            num_scalar_prefetch=0,
            grid=(N,),                                          # one image per step
            in_specs=[
                pl.BlockSpec((None, K_pad, HWp), lambda n: (n, 0, 0)),   # patches
                pl.BlockSpec((C_out, K_pad), lambda n: (0, 0)),          # weights
                pl.BlockSpec((C_out, 1), lambda n: (0, 0)),              # bias
            ],
            out_specs=pl.BlockSpec((None, C_out, HWp), lambda n: (n, 0, 0)),
        ),
        compiler_params=pltpu.CompilerParams(
            # Shards the 2 batch steps across v7x's 2 TensorCores (no-op v5e/v6e).
            dimension_semantics=("parallel",),
            # Fuse the pad/stack/reshape im2col producer chain into the
            # pallas_call operand instead of materializing it in HBM.
            allow_input_fusion=[True, False, False],
        ),
        cost_estimate=cost,
    )(x_col, w_col, bias_2d)

    # (N, C_out, HWp) -> (N, C_out, H, W): drop lane padding (no-op here) and
    # do a free contiguous reshape — no transpose launch on the output path.
    return out[:, :, :HW].reshape(N, C_out, H, W)


if __name__ == "__main__":
    # Small shapes consistent with the module: BasicBlock(in_channels=4, out_channels=8)
    N, C_in, C_out, H, W = 2, 4, 8, 16, 16
    KH = KW = 3

    key = jax.random.PRNGKey(0)
    kx, kw_, kb = jax.random.split(key, 3)

    x = jax.random.normal(kx, (N, C_in, H, W), dtype=jnp.float32)
    # Deterministic synthetic parameters (PyTorch default Conv2d init-ish scale).
    fan_in = C_in * KH * KW
    bound = 1.0 / jnp.sqrt(fan_in)
    weight_oihw = jax.random.uniform(
        kw_, (C_out, C_in, KH, KW), minval=-bound, maxval=bound, dtype=jnp.float32)
    bias = jax.random.uniform(
        kb, (C_out,), minval=-bound, maxval=bound, dtype=jnp.float32)

    fwd = jax.jit(basic_block_forward)
    out = jax.block_until_ready(fwd(x, weight_oihw, bias))

    # Reference check with lax conv (NCHW, OIHW) + bias + ReLU.
    ref = jax.lax.conv_general_dilated(
        x, weight_oihw, window_strides=(1, 1), padding=((1, 1), (1, 1)),
        dimension_numbers=("NCHW", "OIHW", "NCHW"))
    ref = jnp.maximum(ref + bias.reshape(1, C_out, 1, 1), 0.0)

    assert out.shape == (N, C_out, H, W)
    assert jnp.allclose(out, ref, atol=1e-4, rtol=1e-4), float(jnp.max(jnp.abs(out - ref)))
    print("KERNEL_OK")
</pallas_src>

<mosaic_0001>
module attributes {stable_mosaic.version = 11 : i64} {
  func.func @_conv_relu_kernel(%arg0: i32, %arg1: memref<1x40x256xf32, #tpu.memory_space<vmem>>, %arg2: memref<8x40xf32, #tpu.memory_space<vmem>>, %arg3: memref<8x1xf32, #tpu.memory_space<vmem>>, %arg4: memref<1x8x256xf32, #tpu.memory_space<vmem>>) attributes {dimension_semantics = [#tpu.dimension_semantics<parallel>], iteration_bounds = array<i64: 2>, scalar_prefetch = 0 : i64, scratch_operands = 0 : i64, tpu.core_type = #tpu.core_type<tc>, window_params = [{transform_indices = @transform_0, window_bounds = array<i64: 1, 40, 256>}, {pipeline_mode = #tpu.pipeline_mode<synchronous>, transform_indices = @transform_1, window_bounds = array<i64: 8, 40>}, {pipeline_mode = #tpu.pipeline_mode<synchronous>, transform_indices = @transform_2, window_bounds = array<i64: 8, 1>}, {transform_indices = @transform_3, window_bounds = array<i64: 1, 8, 256>}]} {
    %c0 = arith.constant 0 : index
    %c0_0 = arith.constant 0 : index
    %0 = vector.load %arg2[%c0, %c0_0] : memref<8x40xf32, #tpu.memory_space<vmem>>, vector<8x40xf32>
    %c0_1 = arith.constant 0 : index
    %c0_2 = arith.constant 0 : index
    %c0_3 = arith.constant 0 : index
    %1 = vector.load %arg1[%c0_1, %c0_2, %c0_3] : memref<1x40x256xf32, #tpu.memory_space<vmem>>, vector<1x40x256xf32>
    %2 = vector.shape_cast %1 : vector<1x40x256xf32> to vector<40x256xf32>
    %cst = arith.constant dense<0.000000e+00> : vector<8x256xf32>
    %3 = tpu.matmul %0, %2, %cst {dimension_numbers = #tpu.dot_dimension_numbers<[1], [0], [0], [1], [0, 0, 1, 1], [], []>} : vector<8x40xf32>, vector<40x256xf32>, vector<8x256xf32> -> vector<8x256xf32>
    %c0_4 = arith.constant 0 : index
    %c0_5 = arith.constant 0 : index
    %4 = vector.load %arg3[%c0_4, %c0_5] : memref<8x1xf32, #tpu.memory_space<vmem>>, vector<8x1xf32>
    %5 = vector.broadcast %4 : vector<8x1xf32> to vector<8x256xf32>
    %6 = arith.addf %3, %5 : vector<8x256xf32>
    %cst_6 = arith.constant 0.000000e+00 : f32
    %7 = vector.broadcast %cst_6 : f32 to vector<8x256xf32>
    %8 = arith.maximumf %6, %7 : vector<8x256xf32>
    %c0_7 = arith.constant 0 : index
    %c0_8 = arith.constant 0 : index
    %c0_9 = arith.constant 0 : index
    %9 = vector.load %arg4[%c0_7, %c0_8, %c0_9] : memref<1x8x256xf32, #tpu.memory_space<vmem>>, vector<1x8x256xf32>
    %10 = vector.shape_cast %9 : vector<1x8x256xf32> to vector<8x256xf32>
    %11 = vector.shape_cast %8 : vector<8x256xf32> to vector<1x8x256xf32>
    tpu.vector_store %arg4[%c0_7, %c0_8, %c0_9], %11 {strides = array<i32>} : memref<1x8x256xf32, #tpu.memory_space<vmem>>, vector<1x8x256xf32>,
    return
  }
  func.func @transform_0(%arg0: i32) -> (i32, i32, i32) {
    %c0_i32 = arith.constant 0 : i32
    %c0_i32_0 = arith.constant 0 : i32
    %c0_i32_1 = arith.constant 0 : i32
    return %arg0, %c0_i32, %c0_i32_0 : i32, i32, i32
  }
  func.func @transform_1(%arg0: i32) -> (i32, i32) {
    %c0_i32 = arith.constant 0 : i32
    %c0_i32_0 = arith.constant 0 : i32
    %c0_i32_1 = arith.constant 0 : i32
    return %c0_i32, %c0_i32_0 : i32, i32
  }
  func.func @transform_2(%arg0: i32) -> (i32, i32) {
    %c0_i32 = arith.constant 0 : i32
    %c0_i32_0 = arith.constant 0 : i32
    %c0_i32_1 = arith.constant 0 : i32
    return %c0_i32, %c0_i32_0 : i32, i32
  }
  func.func @transform_3(%arg0: i32) -> (i32, i32, i32) {
    %c0_i32 = arith.constant 0 : i32
    %c0_i32_0 = arith.constant 0 : i32
    %c0_i32_1 = arith.constant 0 : i32
    return %arg0, %c0_i32, %c0_i32_0 : i32, i32, i32
  }
}

</mosaic_0001>

<llo_original>
// kernel: basic_block_forward.2
$region0: #{basic_block_forward.2}
  #allocation0 [shape = 'u32[]', space=smem, size = 0x4, offset = 0x4, fixed_abs, tag = 'smem constant byte address 0x4 - core index']
  #allocation1 [shape = 'u32[72,128]{1,0:T(1,128)}', space=vmem, size = 0x9000, scoped, tag = 'internal scratch']
  #allocation2 [shape = 'u32[2048]{0}', space=vmem, size = 0x2000, scoped, tag = 'scoped memory for basic_block_forward.2']
  #allocation3 [shape = 'u32[2048]{0}', space=vmem, size = 0x2000, scoped, tag = 'scoped memory for basic_block_forward.2']
  #allocation4 [shape = 'u32[2048]{0}', space=vmem, size = 0x2000, scoped, tag = 'scoped memory for basic_block_forward.2']
  #allocation5 [shape = 'u32[2048]{0}', space=vmem, size = 0x2000, scoped, tag = 'scoped memory for basic_block_forward.2']
  #allocation6 [shape = 'u32[2048]{0}', space=vmem, size = 0x2000, scoped, tag = 'scoped memory for basic_block_forward.2']
  %s0 = inlined_call_operand.vmem [shape: f32[8,40], index: 0, kind: input, shape index: {}]
  %s1 = inlined_call_operand.vmem [shape: f32[8,1], index: 1, kind: input, shape index: {}]
  %s2 = inlined_call_operand.vmem [shape: f32[2,36,256], index: 2, kind: input, shape index: {}]
  %s3 = inlined_call_operand.<no memory space> [shape: f32[], index: 3, kind: input, shape index: {}]
  %s4 = inlined_call_operand.vmem [shape: f32[2,8,256], index: 4, kind: output, shape index: {}]
  %s5 = sld [smem:[#allocation0]]
  $region45: #{basic_block_forward.2} parent=0
    _
  %s7 = ssub.s32 1, %s5
  %s8 = scalar_select 0, %s7, %s5
  %v9 = vstv %s3
  loop: start=0, step=1, limit=4
  $region2: #{basic_block_forward.2} parent=0 // loop_pre_header
    _
  $region3: #{basic_block_forward.2} parent=0 // loop_header
    %s11 = sphi 0, %s15
    %p12 = scmp.ge.s32.totalorder %s11, 4
    %s21 = sphi 0, %s23
    %s24 = sphi 0, %s21
    %s25 = sphi 0, %s24
    %s41 = sphi 0, %s25
    %s45 = sphi 0, %s45
    %s47 = sphi 0, %s45
    %s48 = sphi 0, %s47
    %s62 = sphi 0, %s48
    %s66 = sphi 0, %s66
    %s68 = sphi 0, %s66
    %s69 = sphi 0, %s68
    %s83 = sphi 0, %s69
    %s89 = sphi 0, %s91
    %s92 = sphi 0, %s89
    %s93 = sphi 0, %s92
    %s109 = sphi 0, %s93
  $region4: #{basic_block_forward.2} parent=0 // loop_header_branch
    %14 = sbr.rel (%p12) target = $region8
  $region5: #{basic_block_forward.2} parent=0 // loop_body
    %s16 = ssub.s32 %s11, 1
    %s17 = ssub.s32 %s11, 2
    %s18 = sadd.s32 %s11, 1
    %s19 = ssub.s32 %s11, %s18
    %p20 = scmp.eq.s32.totalorder %s19, 0
    %s22 = sadd.s32 %s21, 1
    %s23 = scalar_select %p20, %s21, %s22
    %p26 = pneg %p20
    %p27 = scmp.eq.s32.totalorder %s11, 1
    %p28 = por %p26, %p27
    %p29 = scmp.ne.s32.totalorder %s21, %s24
    %p30 = scmp.eq.s32.totalorder %s11, 0
    %p31 = por %p29, %p30
    %p32 = scmp.ne.s32.totalorder %s21, %s24
    %p33 = scmp.eq.s32.totalorder %s16, 1
    %p34 = por %p32, %p33
    %p35 = scmp.ne.s32.totalorder %s24, %s25
    %p36 = scmp.eq.s32.totalorder %s16, 0
    %p37 = por %p35, %p36
    %p38 = scmp.ne.s32.totalorder %s24, %s25
    %p39 = scmp.eq.s32.totalorder %s17, 1
    %p40 = por %p38, %p39
    %p42 = scmp.ne.s32.totalorder %s25, %s41
    %p43 = scmp.eq.s32.totalorder %s17, 0
    %p44 = por %p42, %p43
    %s46 = sadd.s32 %s45, 1
    %p49 = scmp.eq.s32.totalorder %s11, 1
    %p50 = scmp.ne.s32.totalorder %s45, %s47
    %p51 = scmp.eq.s32.totalorder %s11, 0
    %p52 = por %p50, %p51
    %p53 = scmp.ne.s32.totalorder %s45, %s47
    %p54 = scmp.eq.s32.totalorder %s16, 1
    %p55 = por %p53, %p54
    %p56 = scmp.ne.s32.totalorder %s47, %s48
    %p57 = scmp.eq.s32.totalorder %s16, 0
    %p58 = por %p56, %p57
    %p59 = scmp.ne.s32.totalorder %s47, %s48
    %p60 = scmp.eq.s32.totalorder %s17, 1
    %p61 = por %p59, %p60
    %p63 = scmp.ne.s32.totalorder %s48, %s62
    %p64 = scmp.eq.s32.totalorder %s17, 0
    %p65 = por %p63, %p64
    %s67 = sadd.s32 %s66, 1
    %p70 = scmp.eq.s32.totalorder %s11, 1
    %p71 = scmp.ne.s32.totalorder %s66, %s68
    %p72 = scmp.eq.s32.totalorder %s11, 0
    %p73 = por %p71, %p72
    %p74 = scmp.ne.s32.totalorder %s66, %s68
    %p75 = scmp.eq.s32.totalorder %s16, 1
    %p76 = por %p74, %p75
    %p77 = scmp.ne.s32.totalorder %s68, %s69
    %p78 = scmp.eq.s32.totalorder %s16, 0
    %p79 = por %p77, %p78
    %p80 = scmp.ne.s32.totalorder %s68, %s69
    %p81 = scmp.eq.s32.totalorder %s17, 1
    %p82 = por %p80, %p81
    %p84 = scmp.ne.s32.totalorder %s69, %s83
    %p85 = scmp.eq.s32.totalorder %s17, 0
    %p86 = por %p84, %p85
    %s87 = ssub.s32 %s11, %s18
    %p88 = scmp.eq.s32.totalorder %s87, 0
    %s90 = sadd.s32 %s89, 1
    %s91 = scalar_select %p88, %s89, %s90
    %p94 = pneg %p88
    %p95 = scmp.eq.s32.totalorder %s11, 1
    %p96 = por %p94, %p95
    %p97 = scmp.ne.s32.totalorder %s89, %s92
    %p98 = scmp.eq.s32.totalorder %s11, 0
    %p99 = por %p97, %p98
    %p100 = scmp.ne.s32.totalorder %s89, %s92
    %p101 = scmp.eq.s32.totalorder %s16, 1
    %p102 = por %p100, %p101
    %p103 = scmp.ne.s32.totalorder %s92, %s93
    %p104 = scmp.eq.s32.totalorder %s16, 0
    %p105 = por %p103, %p104
    %p106 = scmp.ne.s32.totalorder %s92, %s93
    %p107 = scmp.eq.s32.totalorder %s17, 1
    %p108 = por %p106, %p107
    %p110 = scmp.ne.s32.totalorder %s93, %s109
    %p111 = scmp.eq.s32.totalorder %s17, 0
    %p112 = por %p110, %p111
    %p113 = scmp.le.s32.totalorder 1, %s11
    %p114 = scmp.lt.s32.totalorder %s11, 3
    %p115 = pnand %p113, %p114
    %p116 = pneg %p115
    // Predicated region
    $region9: #{basic_block_forward.2} parent=5 // pred_check
      _
    $region10: #{basic_block_forward.2} parent=5 // pred_check_branch
      %118 = sbr.rel (%p115) target = $region12
    $region11: #{basic_block_forward.2} parent=5 // pred_region
      %s119 = ssub.s32 %s11, 1
      // Predicated region
      $region13: #{basic_block_forward.2} parent=11 // pred_check
        %p120 = pneg %p58
      $region14: #{basic_block_forward.2} parent=11 // pred_check_branch
        %122 = sbr.rel (%p120) target = $region16
      $region15: #{basic_block_forward.2} parent=11 // pred_region
        _
      $region16: #{basic_block_forward.2} parent=11 // pred_fallthru
        _
      // Predicated region
      $region17: #{basic_block_forward.2} parent=11 // pred_check
        %p123 = pneg %p79
      $region18: #{basic_block_forward.2} parent=11 // pred_check_branch
        %125 = sbr.rel (%p123) target = $region20
      $region19: #{basic_block_forward.2} parent=11 // pred_region
        _
      $region20: #{basic_block_forward.2} parent=11 // pred_fallthru
        _
    $region12: #{basic_block_forward.2} parent=5 // pred_fallthru
      _
    %p126 = scmp.lt.s32.totalorder %s11, 2
    // Predicated region
    $region21: #{basic_block_forward.2} parent=5 // pred_check
      %p127 = pneg %p126
    $region22: #{basic_block_forward.2} parent=5 // pred_check_branch
      %129 = sbr.rel (%p127) target = $region24
    $region23: #{basic_block_forward.2} parent=5 // pred_region
      // Predicated region
      $region25: #{basic_block_forward.2} parent=23 // pred_check
        %p130 = pneg %p31
      $region26: #{basic_block_forward.2} parent=23 // pred_check_branch
        %132 = sbr.rel (%p130) target = $region28
      $region27: #{basic_block_forward.2} parent=23 // pred_region
        %p133 = scmp.lt.s32.totalorder %s11, 1
        %s134 = scalar_select %p133, %s11, 1
        %s135 = smul.addr %s134, 10
        %s136 = smul.addr %s135, 8
        %s137 = scalar_lea.vmem %s2, %s136
      $region28: #{basic_block_forward.2} parent=23 // pred_fallthru
        _
    $region24: #{basic_block_forward.2} parent=5 // pred_fallthru
      _
    %p138 = scmp.le.s32.totalorder 1, %s11
    %p139 = scmp.lt.s32.totalorder %s11, 3
    %p140 = pnand %p138, %p139
    %p141 = pneg %p140
    // Predicated region
    $region29: #{basic_block_forward.2} parent=5 // pred_check
      _
    $region30: #{basic_block_forward.2} parent=5 // pred_check_branch
      %143 = sbr.rel (%p140) target = $region32
    $region31: #{basic_block_forward.2} parent=5 // pred_region
      #allocation7 [shape = 'u8[40960]{0}', space=vmem, size = 0xa000, dematerialized = true, scoped, tag = 'FusionAdapter Buffer %fusion.1 = f32[2,40,256]{2,1,0:T(8,128)} fusion(%param_2.1, %param_3), kind=kLoop, calls=%fused_computation.9.clone, metadata={op_name="jit(basic_block_forward)/jit(_pad)/pad" stack_frame_id=11}']
      %s144 = ssub.s32 %s11, 1
      %p145 = scmp.lt.s32.totalorder %s16, 1
      %s146 = scalar_select %p145, %s16, 1
      %s147 = smul.addr %s146, 10
      %s148 = smul.addr %s147, 8
      %s149 = scalar_lea.vmem %s2, %s148
      %p150 = pneg %p37
      %p151 = pneg %p34
      %p152 = pneg %p58
      %p153 = pneg %p55
      %p154 = pneg %p79
      %p155 = pneg %p76
      %p156 = pneg %p105
      %p157 = pneg %p102
      %p158 = scmp.lt.s32.totalorder %s16, 1
      %s159 = scalar_select %p158, %s16, 1
      %s160 = smul.addr %s159, 2
      %s161 = smul.addr %s160, 8
      %s162 = scalar_lea.vmem %s4, %s161
      %p163 = scmp.lt.s32.totalorder %s16, 1
      %s164 = scalar_select %p163, %s16, 1
      %s165 = smul.addr %s164, 10
      %s166 = smul.addr %s165, 8
      %s167 = scalar_lea.vmem %s2, %s166
      %p168 = scmp.lt.s32.totalorder %s16, 1
      %s169 = scalar_select %p168, %s16, 1
      %s170 = smul.addr %s169, 2
      %s171 = smul.addr %s170, 8
      %s172 = scalar_lea.vmem %s4, %s171
      %v173 = vld [vmem:[%s167] sm:$0xff]
      %v174 = vlaneseq
      %v175 = vshrl.u32 %v174, 7
      %vm177 = vcmp.lt.s32.totalorder %v175, 36
      %v178 = vsel %vm177, %v173, %v9
      %s180 = ssub.s32 256, 1
      %181 = vst [vmem:[#allocation7] sm:%s180] %v178
      %s182 = scalar_lea.vmem %s167, 8
      %v183 = vld [vmem:[%s182] sm:$0xff]
      %v184 = vlaneseq
      %v185 = vshrl.u32 %v184, 7
      %vm187 = vcmp.lt.s32.totalorder %v185, 36
      %v188 = vsel %vm187, %v183, %v9
      %s189 = scalar_lea.vmem [#allocation7], 8
      %s191 = ssub.s32 256, 1
      %192 = vst [vmem:[%s189] sm:%s191] %v188
      %s193 = scalar_lea.vmem %s167, 16
      %v194 = vld [vmem:[%s193] sm:$0xff]
      %v195 = vlaneseq
      %v196 = vshrl.u32 %v195, 7
      %v197 = vadd.s32 %v196, 8
      %vm198 = vcmp.lt.s32.totalorder %v197, 36
      %v199 = vsel %vm198, %v194, %v9
      %s200 = scalar_lea.vmem [#allocation7], 16
      %s202 = ssub.s32 256, 1
      %203 = vst [vmem:[%s200] sm:%s202] %v199
      %s204 = scalar_lea.vmem %s167, 24
      %v205 = vld [vmem:[%s204] sm:$0xff]
      %v206 = vlaneseq
      %v207 = vshrl.u32 %v206, 7
      %v208 = vadd.s32 %v207, 8
      %vm209 = vcmp.lt.s32.totalorder %v208, 36
      %v210 = vsel %vm209, %v205, %v9
      %s211 = scalar_lea.vmem [#allocation7], 24
      %s213 = ssub.s32 256, 1
      %214 = vst [vmem:[%s211] sm:%s213] %v210
      %s215 = scalar_lea.vmem %s167, 32
      %v216 = vld [vmem:[%s215] sm:$0xff]
      %v217 = vlaneseq
      %v218 = vshrl.u32 %v217, 7
      %v219 = vadd.s32 %v218, 16
      %vm220 = vcmp.lt.s32.totalorder %v219, 36
      %v221 = vsel %vm220, %v216, %v9
      %s222 = scalar_lea.vmem [#allocation7], 32
      %s224 = ssub.s32 256, 1
      %225 = vst [vmem:[%s222] sm:%s224] %v221
      %s226 = scalar_lea.vmem %s167, 40
      %v227 = vld [vmem:[%s226] sm:$0xff]
      %v228 = vlaneseq
      %v229 = vshrl.u32 %v228, 7
      %v230 = vadd.s32 %v229, 16
      %vm231 = vcmp.lt.s32.totalorder %v230, 36
      %v232 = vsel %vm231, %v227, %v9
      %s233 = scalar_lea.vmem [#allocation7], 40
      %s235 = ssub.s32 256, 1
      %236 = vst [vmem:[%s233] sm:%s235] %v232
      %s237 = scalar_lea.vmem %s167, 48
      %v238 = vld [vmem:[%s237] sm:$0xff]
      %v239 = vlaneseq
      %v240 = vshrl.u32 %v239, 7
      %v241 = vadd.s32 %v240, 24
      %vm242 = vcmp.lt.s32.totalorder %v241, 36
      %v243 = vsel %vm242, %v238, %v9
      %s244 = scalar_lea.vmem [#allocation7], 48
      %s246 = ssub.s32 256, 1
      %247 = vst [vmem:[%s244] sm:%s246] %v243
      %s248 = scalar_lea.vmem %s167, 56
      %v249 = vld [vmem:[%s248] sm:$0xff]
      %v250 = vlaneseq
      %v251 = vshrl.u32 %v250, 7
      %v252 = vadd.s32 %v251, 24
      %vm253 = vcmp.lt.s32.totalorder %v252, 36
      %v254 = vsel %vm253, %v249, %v9
      %s255 = scalar_lea.vmem [#allocation7], 56
      %s257 = ssub.s32 256, 1
      %258 = vst [vmem:[%s255] sm:%s257] %v254
      %s259 = scalar_lea.vmem %s167, 64
      %v260 = vld [vmem:[%s259] sm:$0xff]
      %v261 = vlaneseq
      %v262 = vshrl.u32 %v261, 7
      %v263 = vadd.s32 %v262, 32
      %vm264 = vcmp.lt.s32.totalorder %v263, 36
      %v265 = vsel %vm264, %v260, %v9
      %s266 = scalar_lea.vmem [#allocation7], 64
      %s268 = ssub.s32 256, 1
      %269 = vst [vmem:[%s266] sm:%s268] %v265
      %s270 = scalar_lea.vmem %s167, 72
      %v271 = vld [vmem:[%s270] sm:$0xff]
      %v272 = vlaneseq
      %v273 = vshrl.u32 %v272, 7
      %v274 = vadd.s32 %v273, 32
      %vm275 = vcmp.lt.s32.totalorder %v274, 36
      %v276 = vsel %vm275, %v271, %v9
      %s277 = scalar_lea.vmem [#allocation7], 72
      %s279 = ssub.s32 256, 1
      %280 = vst [vmem:[%s277] sm:%s279] %v276
      %v281 = vld [vmem:[%s0] sm:$0xff]
      %v282 = vld [vmem:[#allocation7] sm:$0xff]
      %v283 = vld [vmem:[#allocation7 + $0x8] sm:$0xff]
      %v284 = vld [vmem:[#allocation7 + $0x10] sm:$0xff]
      %v285 = vld [vmem:[#allocation7 + $0x18] sm:$0xff]
      %v286 = vld [vmem:[#allocation7 + $0x20] sm:$0xff]
      %v287 = vld [vmem:[#allocation7 + $0x28] sm:$0xff]
      %v288 = vld [vmem:[#allocation7 + $0x30] sm:$0xff]
      %v289 = vld [vmem:[#allocation7 + $0x38] sm:$0xff]
      %v290 = vld [vmem:[#allocation7 + $0x40] sm:$0xff]
      %v291 = vld [vmem:[#allocation7 + $0x48] sm:$0xff]
      %v292 = vld [vmem:[%s1] sm:$0xff]
      %294 = vset.pattern.permute.xlu0 0
      %295 = vperm.xlu0 %294, %v292
      %v296 = vpop.permute.xlu0 %295
      %vm298 = vcmask 326656
      %v300 = vsel %vm298, %v281, 0
      %302 = vmatpush.msra.mxu0 0.0
      %303 = vmatpush.msra.mxu0 0.0
      %304 = vmatpush.msra.mxu0 0.0
      %305 = vmatpush.msra.mxu0 0.0
      %306 = vmatpush.msra.mxu0 0.0
      %307 = vmatpush.msra.mxu0 0.0
      %308 = vmatpush.msra.mxu0 0.0
      %309 = vmatpush.msra.mxu0 0.0
      %310 = vmatpush.msra.mxu0 0.0
      %311 = vmatpush.msra.mxu0 0.0
      %312 = vmatpush.msra.mxu0 0.0
      %313 = vmatpush.msra.mxu0 %v290
      %314 = vmatpush.msra.mxu0 %v288
      %315 = vmatpush.msra.mxu0 %v286
      %316 = vmatpush.msra.mxu0 %v284
      %317 = vmatpush.msra.mxu0 %v282
      %318 = vmatmul.f32.gmra.mxu0 %v300
      %v319 = vpop.f32.mrf.mxu0
      %v320 = vadd.f32 %v296, %v319
      %321 = vdwg.mxu0
      %322 = vmatpush.msra.mxu0 0.0
      %323 = vmatpush.msra.mxu0 0.0
      %324 = vmatpush.msra.mxu0 0.0
      %325 = vmatpush.msra.mxu0 0.0
      %326 = vmatpush.msra.mxu0 0.0
      %327 = vmatpush.msra.mxu0 0.0
      %328 = vmatpush.msra.mxu0 0.0
      %329 = vmatpush.msra.mxu0 0.0
      %330 = vmatpush.msra.mxu0 0.0
      %331 = vmatpush.msra.mxu0 0.0
      %332 = vmatpush.msra.mxu0 0.0
      %333 = vmatpush.msra.mxu0 %v291
      %334 = vmatpush.msra.mxu0 %v289
      %335 = vmatpush.msra.mxu0 %v287
      %336 = vmatpush.msra.mxu0 %v285
      %337 = vmatpush.msra.mxu0 %v283
      %338 = vmatmul.f32.gmra.mxu0 %v300
      %v339 = vpop.f32.mrf.mxu0
      %v340 = vadd.f32 %v296, %v339
      %341 = vdwg.mxu0
      %v342 = vmax.f32 %v320, 0.0
      %v343 = vmax.f32 %v340, 0.0
      %344 = vst [vmem:[%s172] sm:$0xff] %v342
      %345 = vst [vmem:[%s172 + $0x8] sm:$0xff] %v343
      %p346 = scmp.lt.s32.totalorder %s16, 1
      %s347 = scalar_select %p346, %s16, 1
      %s348 = smul.addr %s347, 2
      %s349 = smul.addr %s348, 8
      %s350 = scalar_lea.vmem %s4, %s349
      // Predicated region
      $region33: #{basic_block_forward.2} parent=31 // pred_check
        %p351 = pneg %p102
      $region34: #{basic_block_forward.2} parent=31 // pred_check_branch
        %353 = sbr.rel (%p351) target = $region36
      $region35: #{basic_block_forward.2} parent=31 // pred_region
        _
      $region36: #{basic_block_forward.2} parent=31 // pred_fallthru
        _
    $region32: #{basic_block_forward.2} parent=5 // pred_fallthru
      _
    %p354 = scmp.le.s32.totalorder 2, %s11
    // Predicated region
    $region37: #{basic_block_forward.2} parent=5 // pred_check
      %p355 = pneg %p354
    $region38: #{basic_block_forward.2} parent=5 // pred_check_branch
      %357 = sbr.rel (%p355) target = $region40
    $region39: #{basic_block_forward.2} parent=5 // pred_region
      %s358 = ssub.s32 %s11, 2
      // Predicated region
      $region41: #{basic_block_forward.2} parent=39 // pred_check
        %p359 = pneg %p108
      $region42: #{basic_block_forward.2} parent=39 // pred_check_branch
        %361 = sbr.rel (%p359) target = $region44
      $region43: #{basic_block_forward.2} parent=39 // pred_region
        %p362 = scmp.lt.s32.totalorder %s17, 1
        %s363 = scalar_select %p362, %s17, 1
        %s364 = smul.addr %s363, 2
        %s365 = smul.addr %s364, 8
        %s366 = scalar_lea.vmem %s4, %s365
      $region44: #{basic_block_forward.2} parent=39 // pred_fallthru
        _
    $region40: #{basic_block_forward.2} parent=5 // pred_fallthru
      _
  $region6: #{basic_block_forward.2} parent=0 // loop_footer
    %s15 = sadd.s32 1, %s11
  $region7: #{basic_block_forward.2} parent=0 // loop_footer_branch
    %10 = sbr.rel target = $region3
  $region8: #{basic_block_forward.2} parent=0 // loop_exit
    _

</llo_original>
